<compile_context>
chip_gen: v7x
topology: tpu7x:2x2x1
jax: 0.10.0
libtpu: 0.0.40
codegen_flags: <defaults>
</compile_context>

<pallas_src>
import functools
import math

import jax
import jax.numpy as jnp
from jax import lax
from jax.experimental import pallas as pl
from jax.experimental.pallas import tpu as pltpu


_VMEM_LIMIT = 48 * 1024 * 1024          # scoped VMEM cap (safe on v5e/v6e/v7x)
_WEIGHT_RESIDENT_LIMIT = 16 * 1024 * 1024   # keep W fully in VMEM below this
_ATTN_VMEM_BUDGET = 24 * 1024 * 1024        # per-step attention working set


# ----------------------------------------------------------------------------
# Tiling helpers
# ----------------------------------------------------------------------------
def _pick_tile(dim, target, quantum):
    """Largest tile <= target that divides `dim` and is a multiple of
    `quantum`; falls back to the full dimension (full-extent blocks always
    satisfy the Mosaic (8,128) constraint)."""
    if dim <= target:
        return dim
    t = (target // quantum) * quantum
    while t >= quantum:
        if dim % t == 0:
            return t
        t -= quantum
    return dim


def _row_quantum(dtype):
    # bf16 packs two rows per sublane -> keep tm a multiple of 16.
    return 16 if jnp.dtype(dtype).itemsize < 4 else 8


# ----------------------------------------------------------------------------
# Kernel 1a: weight-resident linear, y = x @ W + b, grid over rows only.
# Optionally splits the output columns into several arrays (fused QKV / KV).
# ----------------------------------------------------------------------------
def _linear_resident_kernel(x_ref, w_ref, b_ref, *o_refs, splits):
    x = x_ref[...].astype(w_ref.dtype)           # cast to MXU dtype in-kernel
    acc = jnp.dot(x, w_ref[...], preferred_element_type=jnp.float32)
    acc = acc + b_ref[...].astype(jnp.float32)
    off = 0
    for o_ref, width in zip(o_refs, splits):
        o_ref[...] = acc[:, off:off + width].astype(o_ref.dtype)
        off += width


def _linear_resident(x2d, w_t, b, *, splits, out_dtype, tm=256):
    M, D = x2d.shape
    Dout = w_t.shape[1]
    tm = _pick_tile(M, tm, _row_quantum(w_t.dtype))
    kernel = functools.partial(_linear_resident_kernel, splits=tuple(splits))
    out_shape = tuple(jax.ShapeDtypeStruct((M, s), out_dtype) for s in splits)
    out_specs = tuple(pl.BlockSpec((tm, s), lambda i: (i, 0)) for s in splits)
    outs = pl.pallas_call(
        kernel,
        out_shape=out_shape,
        grid_spec=pltpu.PrefetchScalarGridSpec(
            num_scalar_prefetch=0,
            grid=(M // tm,),
            in_specs=[
                pl.BlockSpec((tm, D), lambda i: (i, 0)),       # x rows
                pl.BlockSpec((D, Dout), lambda i: (0, 0)),     # resident weight
                pl.BlockSpec((1, Dout), lambda i: (0, 0)),     # resident bias
            ],
            out_specs=out_specs,
        ),
        compiler_params=pltpu.CompilerParams(
            dimension_semantics=("parallel",),
            vmem_limit_bytes=_VMEM_LIMIT,
        ),
    )(x2d, w_t, b)
    if not isinstance(outs, (tuple, list)):
        outs = (outs,)
    return tuple(outs)


# ----------------------------------------------------------------------------
# Kernel 1b: tiled fallback (weight too large to keep resident in VMEM)
# ----------------------------------------------------------------------------
def _linear_tiled_kernel(x_ref, w_ref, b_ref, o_ref, acc_ref):
    @pl.when(pl.program_id(2) == 0)
    def _():
        acc_ref[...] = jnp.zeros_like(acc_ref)

    acc_ref[...] += jnp.dot(x_ref[...].astype(w_ref.dtype), w_ref[...],
                            preferred_element_type=jnp.float32)

    @pl.when(pl.program_id(2) == pl.num_programs(2) - 1)
    def _():
        o_ref[...] = (acc_ref[...]
                      + b_ref[...].astype(jnp.float32)).astype(o_ref.dtype)


def _linear_tiled(x2d, w_t, b, *, out_dtype, tm=512, tn=512, tk=512):
    M, D = x2d.shape
    Dout = w_t.shape[1]
    tm = _pick_tile(M, tm, _row_quantum(w_t.dtype))
    tn = _pick_tile(Dout, tn, 128)
    tk = _pick_tile(D, tk, 128)
    grid = (M // tm, Dout // tn, D // tk)
    return pl.pallas_call(
        _linear_tiled_kernel,
        out_shape=jax.ShapeDtypeStruct((M, Dout), out_dtype),
        grid_spec=pltpu.PrefetchScalarGridSpec(
            num_scalar_prefetch=0,
            grid=grid,
            in_specs=[
                pl.BlockSpec((tm, tk), lambda i, j, k: (i, k)),
                pl.BlockSpec((tk, tn), lambda i, j, k: (k, j)),
                pl.BlockSpec((1, tn), lambda i, j, k: (0, j)),
            ],
            out_specs=pl.BlockSpec((tm, tn), lambda i, j, k: (i, j)),
            scratch_shapes=[pltpu.VMEM((tm, tn), jnp.float32)],
        ),
        compiler_params=pltpu.CompilerParams(
            dimension_semantics=("parallel", "parallel", "arbitrary"),
            vmem_limit_bytes=_VMEM_LIMIT,
        ),
    )(x2d, w_t, b)


def project(x2d, w_t, b, *, splits, out_dtype):
    """y = x @ W + b, column-split into len(splits) outputs."""
    assert sum(splits) == w_t.shape[1]
    w_bytes = w_t.size * jnp.dtype(w_t.dtype).itemsize
    if w_bytes <= _WEIGHT_RESIDENT_LIMIT:
        return _linear_resident(x2d, w_t, b, splits=splits, out_dtype=out_dtype)
    # Fallback for very large weights: tiled matmul, split in the wrapper.
    y = _linear_tiled(x2d, w_t, b, out_dtype=out_dtype)
    outs, off = [], 0
    for s in splits:
        outs.append(y[:, off:off + s])
        off += s
    return tuple(outs)


# ----------------------------------------------------------------------------
# Kernel 2: multi-head attention, one (batch, head-group) per grid step.
#   Inputs are lane-dense (N, L, D) views of the projections (free reshapes);
#   scale is already folded into Wq.  Output is written lane-dense (Lq, G*dh).
# ----------------------------------------------------------------------------
def _attention_kernel(q_ref, k_ref, v_ref, bias_ref, o_ref, *, heads, head_dim):
    # q_ref: (1, Lq, G*dh)  k_ref/v_ref: (1, L, G*dh)  bias_ref: (1, Lq, L)
    qb = q_ref[0]
    kb = k_ref[0]
    vb = v_ref[0]
    bias = bias_ref[0].astype(jnp.float32)            # once per grid step
    ctxs = []
    for h in range(heads):                             # small static unroll
        sl = slice(h * head_dim, (h + 1) * head_dim)
        q = qb[:, sl]                                  # (Lq, dh)
        k = kb[:, sl]                                  # (L, dh)
        v = vb[:, sl]                                  # (L, dh)
        # QK^T: contract over dh (transposed RHS handled by the MXU lowering).
        s = lax.dot_general(q, k, (((1,), (1,)), ((), ())),
                            preferred_element_type=jnp.float32)
        s = s + bias
        mx = jnp.max(s, axis=-1, keepdims=True)
        ex = jnp.exp(s - mx)
        l = jnp.sum(ex, axis=-1, keepdims=True)
        ctx = jnp.dot(ex.astype(v.dtype), v, preferred_element_type=jnp.float32)
        # Normalize after PV: Lq*dh multiplies instead of Lq*L.
        ctxs.append(ctx * pl.reciprocal(l, approx=True))
    # Single lane-dense store for the whole head group.
    o_ref[0] = jnp.concatenate(ctxs, axis=-1).astype(o_ref.dtype)
    # TODO(synk): attention_probs dropout (train-mode only) omitted; eval
    # semantics (identity) are reproduced here.


def _pick_head_group(H, dh, Lq, L, in_bytes, out_bytes, budget):
    """Largest divisor of H whose per-step working set fits the VMEM budget
    and whose output slab is lane-dense (G*dh % 128 == 0) or covers all heads."""
    candidates = [g for g in range(H, 0, -1)
                  if H % g == 0 and ((g * dh) % 128 == 0 or g == H)]
    for g in candidates:
        gd = g * dh
        ws = 2 * (Lq + 2 * L) * gd * in_bytes          # double-buffered Q,K,V
        ws += 2 * Lq * gd * out_bytes                  # double-buffered output
        ws += 2 * Lq * L * in_bytes                    # additive bias block
        ws += 3 * Lq * L * 4                           # f32 score/exp temps
        if ws <= budget:
            return g
    return candidates[-1]


def multi_head_attention(q3, k3, v3, bias3, *, num_heads, out_dtype):
    # q3: (N, Lq, D)  k3/v3: (N, L, D)  bias3: (N, Lq, L) additive bias
    N, Lq, D = q3.shape
    L = k3.shape[1]
    dh = D // num_heads
    G = _pick_head_group(num_heads, dh, Lq, L,
                         jnp.dtype(q3.dtype).itemsize,
                         jnp.dtype(out_dtype).itemsize,
                         _ATTN_VMEM_BUDGET)
    GD = G * dh
    kernel = functools.partial(_attention_kernel, heads=G, head_dim=dh)
    # TODO(synk): for very long sequences convert to a flash-style online
    # softmax over L tiles so VMEM no longer scales with Lq*L (esp. v7x).
    return pl.pallas_call(
        kernel,
        out_shape=jax.ShapeDtypeStruct((N, Lq, D), out_dtype),
        grid_spec=pltpu.PrefetchScalarGridSpec(
            num_scalar_prefetch=0,
            grid=(N, num_heads // G),
            in_specs=[
                pl.BlockSpec((1, Lq, GD), lambda b, g: (b, 0, g)),
                pl.BlockSpec((1, L, GD), lambda b, g: (b, 0, g)),
                pl.BlockSpec((1, L, GD), lambda b, g: (b, 0, g)),
                pl.BlockSpec((1, Lq, L), lambda b, g: (b, 0, 0)),
            ],
            out_specs=pl.BlockSpec((1, Lq, GD), lambda b, g: (b, 0, g)),
        ),
        compiler_params=pltpu.CompilerParams(
            dimension_semantics=("parallel", "parallel"),
            vmem_limit_bytes=_VMEM_LIMIT,
        ),
    )(q3, k3, v3, bias3)


# ----------------------------------------------------------------------------
# Module wrapper
# ----------------------------------------------------------------------------
class BertSelfAttentionPallas:
    def __init__(self, hidden_size, num_attention_heads, key,
                 compute_dtype=jnp.bfloat16):
        if hidden_size % num_attention_heads != 0:
            raise ValueError("hidden_size must be a multiple of num heads")
        self.num_attention_heads = num_attention_heads
        self.attention_head_size = hidden_size // num_attention_heads
        self.all_head_size = hidden_size
        self.compute_dtype = compute_dtype

        keys = jax.random.split(key, 6)
        bound = 1.0 / math.sqrt(hidden_size)

        # PyTorch nn.Linear stores W as (out, in); y = x @ W.T + b.
        # We store the already-transposed (in, out) matrix for the kernels.
        def init_linear(kw, kb):
            w = jax.random.uniform(kw, (hidden_size, hidden_size),
                                   jnp.float32, -bound, bound)
            b = jax.random.uniform(kb, (1, hidden_size),
                                   jnp.float32, -bound, bound)
            return w, b

        self.wq_t, self.bq = init_linear(keys[0], keys[1])
        self.wk_t, self.bk = init_linear(keys[2], keys[3])
        self.wv_t, self.bv = init_linear(keys[4], keys[5])

        self._cache = {}                       # per-compute-dtype cast params

    def _params(self, cdt):
        """Weights pre-cast to the compute dtype (done once and cached);
        the 1/sqrt(dh) score scale is folded into Wq / bq."""
        name = jnp.dtype(cdt).name
        if name not in self._cache:
            scale = 1.0 / math.sqrt(self.attention_head_size)
            wq_s = self.wq_t * scale
            bq_s = self.bq * scale
            self._cache[name] = dict(
                wq=wq_s.astype(cdt), bq=bq_s.astype(cdt),
                wk=self.wk_t.astype(cdt), bk=self.bk.astype(cdt),
                wv=self.wv_t.astype(cdt), bv=self.bv.astype(cdt),
                w_qkv=jnp.concatenate([wq_s, self.wk_t, self.wv_t], 1).astype(cdt),
                b_qkv=jnp.concatenate([bq_s, self.bk, self.bv], 1).astype(cdt),
                w_kv=jnp.concatenate([self.wk_t, self.wv_t], 1).astype(cdt),
                b_kv=jnp.concatenate([self.bk, self.bv], 1).astype(cdt),
            )
        return self._cache[name]

    def __call__(self, query_states, key_states, value_states,
                 attention_mask=None):
        N, Lq, D = query_states.shape
        L = key_states.shape[1]
        cdt = self.compute_dtype
        out_dtype = query_states.dtype
        p = self._params(cdt)

        qx = query_states.reshape(N * Lq, D)            # free reshapes; the
        kx = key_states.reshape(N * L, D)               # kernel casts to the
        vx = value_states.reshape(N * L, D)             # MXU dtype itself

        if (query_states is key_states) and (key_states is value_states):
            mixed_q, mixed_k, mixed_v = project(
                qx, p["w_qkv"], p["b_qkv"], splits=(D, D, D), out_dtype=cdt)
        elif key_states is value_states:
            (mixed_q,) = project(qx, p["wq"], p["bq"], splits=(D,),
                                 out_dtype=cdt)
            mixed_k, mixed_v = project(kx, p["w_kv"], p["b_kv"],
                                       splits=(D, D), out_dtype=cdt)
        else:
            (mixed_q,) = project(qx, p["wq"], p["bq"], splits=(D,),
                                 out_dtype=cdt)
            (mixed_k,) = project(kx, p["wk"], p["bk"], splits=(D,),
                                 out_dtype=cdt)
            (mixed_v,) = project(vx, p["wv"], p["bv"], splits=(D,),
                                 out_dtype=cdt)

        # Free reshapes (no HBM transposes) -- heads are split in-kernel.
        q3 = mixed_q.reshape(N, Lq, D)
        k3 = mixed_k.reshape(N, L, D)
        v3 = mixed_v.reshape(N, L, D)

        # Additive bias precomputed once (halves mask DMA when cdt is bf16).
        bias_dtype = cdt if jnp.dtype(cdt).itemsize < 4 else jnp.float32
        if attention_mask is None:
            bias3 = jnp.zeros((N, Lq, L), bias_dtype)
        else:
            bias3 = ((1.0 - attention_mask.astype(jnp.float32))
                     * -10000.0).astype(bias_dtype)

        return multi_head_attention(q3, k3, v3, bias3,
                                    num_heads=self.num_attention_heads,
                                    out_dtype=out_dtype)        # (N, Lq, D)


# ----------------------------------------------------------------------------
# Pure-JAX reference (matches the PyTorch forward, eval-mode dropout)
# ----------------------------------------------------------------------------
def reference(mod, q, k, v, mask):
    N, Lq, D = q.shape
    L = k.shape[1]
    H, dh = mod.num_attention_heads, mod.attention_head_size

    mq = q @ mod.wq_t + mod.bq[0]
    mk = k @ mod.wk_t + mod.bk[0]
    mv = v @ mod.wv_t + mod.bv[0]

    def tfs(x, Ls):
        return jnp.transpose(x.reshape(N, Ls, H, dh), (0, 2, 1, 3))

    Q, K, V = tfs(mq, Lq), tfs(mk, L), tfs(mv, L)
    scores = jnp.einsum("nhqd,nhkd->nhqk", Q, K) / math.sqrt(dh)
    scores = scores + ((1.0 - mask) * -10000.0)[:, None, :, :]
    probs = jax.nn.softmax(scores, axis=-1)
    ctx = jnp.einsum("nhqk,nhkd->nhqd", probs, V)
    return jnp.transpose(ctx, (0, 2, 1, 3)).reshape(N, Lq, D)


if __name__ == "__main__":
    key = jax.random.PRNGKey(0)
    k_param, k_q, k_k, k_v = jax.random.split(key, 4)

    N, Lq, L, D, H = 2, 8, 8, 32, 4
    module = BertSelfAttentionPallas(hidden_size=D, num_attention_heads=H,
                                     key=k_param, compute_dtype=jnp.float32)

    q = jax.random.normal(k_q, (N, Lq, D), jnp.float32)
    kk = jax.random.normal(k_k, (N, L, D), jnp.float32)
    v = jax.random.normal(k_v, (N, L, D), jnp.float32)

    # mask: last two key positions of batch 1 are padded out
    mask = jnp.ones((N, Lq, L), jnp.float32)
    mask = mask.at[1, :, -2:].set(0.0)

    # 1) cross-attention (distinct Q/K/V inputs), f32 compute
    out = jax.block_until_ready(module(q, kk, v, mask))
    ref = reference(module, q, kk, v, mask)
    assert out.shape == (N, Lq, D)
    assert jnp.allclose(out, ref, atol=5e-3, rtol=5e-3), "cross-attn mismatch"

    # 2) self-attention (shared input): fused QKV projection (3-output kernel)
    out_self = jax.block_until_ready(module(q, q, q, mask))
    ref_self = reference(module, q, q, q, mask)
    assert jnp.allclose(out_self, ref_self, atol=5e-3, rtol=5e-3), \
        "self-attn (fused QKV) mismatch"

    # 3) shared key/value: fused KV projection (2-output kernel)
    out_kv = jax.block_until_ready(module(q, kk, kk, mask))
    ref_kv = reference(module, q, kk, kk, mask)
    assert jnp.allclose(out_kv, ref_kv, atol=5e-3, rtol=5e-3), \
        "fused KV mismatch"

    # 4) bf16 MXU compute with f32 accumulation (loosened tolerance)
    module.compute_dtype = jnp.bfloat16
    out_bf16 = jax.block_until_ready(module(q, kk, v, mask))
    assert jnp.allclose(out_bf16, ref, atol=5e-2, rtol=5e-2), "bf16 mismatch"

    print("KERNEL_OK")
</pallas_src>

<mosaic_0001>
module attributes {stable_mosaic.version = 11 : i64} {
  func.func @_linear_resident_kernel(%arg0: i32, %arg1: memref<16x32xf32, #tpu.memory_space<vmem>>, %arg2: memref<32x32xf32, #tpu.memory_space<vmem>>, %arg3: memref<1x32xf32, #tpu.memory_space<vmem>>, %arg4: memref<16x32xf32, #tpu.memory_space<vmem>>) attributes {dimension_semantics = [#tpu.dimension_semantics<parallel>], iteration_bounds = array<i64: 1>, scalar_prefetch = 0 : i64, scratch_operands = 0 : i64, tpu.core_type = #tpu.core_type<tc>, window_params = [{transform_indices = @transform_0, window_bounds = array<i64: 16, 32>}, {pipeline_mode = #tpu.pipeline_mode<synchronous>, transform_indices = @transform_1, window_bounds = array<i64: 32, 32>}, {pipeline_mode = #tpu.pipeline_mode<synchronous>, transform_indices = @transform_2, window_bounds = array<i64: 1, 32>}, {transform_indices = @transform_3, window_bounds = array<i64: 16, 32>}]} {
    %c0 = arith.constant 0 : index
    %c0_0 = arith.constant 0 : index
    %0 = vector.load %arg1[%c0, %c0_0] : memref<16x32xf32, #tpu.memory_space<vmem>>, vector<16x32xf32>
    %c0_1 = arith.constant 0 : index
    %c0_2 = arith.constant 0 : index
    %1 = vector.load %arg2[%c0_1, %c0_2] : memref<32x32xf32, #tpu.memory_space<vmem>>, vector<32x32xf32>
    %cst = arith.constant dense<0.000000e+00> : vector<16x32xf32>
    %2 = tpu.matmul %0, %1, %cst {dimension_numbers = #tpu.dot_dimension_numbers<[1], [0], [0], [1], [0, 0, 1, 1], [], []>} : vector<16x32xf32>, vector<32x32xf32>, vector<16x32xf32> -> vector<16x32xf32>
    %c0_3 = arith.constant 0 : index
    %c0_4 = arith.constant 0 : index
    %3 = vector.load %arg3[%c0_3, %c0_4] : memref<1x32xf32, #tpu.memory_space<vmem>>, vector<1x32xf32>
    %4 = vector.broadcast %3 : vector<1x32xf32> to vector<16x32xf32>
    %5 = arith.addf %2, %4 : vector<16x32xf32>
    %c0_5 = arith.constant 0 : index
    %c0_6 = arith.constant 0 : index
    %6 = vector.load %arg4[%c0_5, %c0_6] : memref<16x32xf32, #tpu.memory_space<vmem>>, vector<16x32xf32>
    tpu.vector_store %arg4[%c0_5, %c0_6], %5 {strides = array<i32>} : memref<16x32xf32, #tpu.memory_space<vmem>>, vector<16x32xf32>,
    return
  }
  func.func @transform_0(%arg0: i32) -> (i32, i32) {
    %c0_i32 = arith.constant 0 : i32
    %c0_i32_0 = arith.constant 0 : i32
    return %arg0, %c0_i32 : i32, i32
  }
  func.func @transform_1(%arg0: i32) -> (i32, i32) {
    %c0_i32 = arith.constant 0 : i32
    %c0_i32_0 = arith.constant 0 : i32
    %c0_i32_1 = arith.constant 0 : i32
    return %c0_i32, %c0_i32_0 : i32, i32
  }
  func.func @transform_2(%arg0: i32) -> (i32, i32) {
    %c0_i32 = arith.constant 0 : i32
    %c0_i32_0 = arith.constant 0 : i32
    %c0_i32_1 = arith.constant 0 : i32
    return %c0_i32, %c0_i32_0 : i32, i32
  }
  func.func @transform_3(%arg0: i32) -> (i32, i32) {
    %c0_i32 = arith.constant 0 : i32
    %c0_i32_0 = arith.constant 0 : i32
    return %arg0, %c0_i32 : i32, i32
  }
}

</mosaic_0001>

<llo_original>
// kernel: tpu_custom_call.1
$region0: #{tpu_custom_call.1}
  #allocation0 [shape = 'u32[]', space=smem, size = 0x4, offset = 0x4, fixed_abs, tag = 'smem constant byte address 0x4 - core index']
  #allocation1 [shape = 'u32[144,128]{1,0:T(1,128)}', space=vmem, size = 0x12000, scoped, tag = 'internal scratch']
  %s0 = inlined_call_operand.hbm [shape: f32[16,32], index: 0, kind: input, shape index: {}]
  %s1 = inlined_call_operand.hbm [shape: f32[32,32], index: 1, kind: input, shape index: {}]
  %s2 = inlined_call_operand.vmem [shape: f32[1,32], index: 2, kind: input, shape index: {}]
  %s3 = inlined_call_operand.hbm [shape: f32[16,32], index: 3, kind: output, shape index: {}]
  %s4 = sld [smem:[#allocation0]]
  $region30: #{tpu_custom_call.1} parent=0
    _
  %s6 = ssub.s32 1, %s4
  %s7 = scalar_select 0, %s6, %s4
  $region1: #{tpu_custom_call.1} parent=0
    #allocation2 [shape = 'u8[8192]{0}', space=vmem, size = 0x2000, scoped, tag = 'input window, operand 0, single buffered']
    #allocation3 [shape = 's32[1]{0}', space=sflag, size = 0x4, scoped, tag = 'scoped memory for tpu_custom_call.1']
    #allocation4 [shape = 's32[1]{0}', space=sflag, size = 0x4, scoped, tag = 'scoped memory for tpu_custom_call.1']
    #allocation5 [shape = 'u8[16384]{0}', space=vmem, size = 0x4000, scoped, tag = 'input window, operand 1, single buffered']
    #allocation6 [shape = 's32[1]{0}', space=sflag, size = 0x4, scoped, tag = 'scoped memory for tpu_custom_call.1']
    #allocation7 [shape = 'u8[8192]{0}', space=vmem, size = 0x2000, scoped, tag = 'output window, operand 0, single buffered']
    %8 = vsyncpa [#allocation3], 0
    %9 = vsyncpa [#allocation6], 0
    %10 = vsyncpa [#allocation4], 0
    // Predicated region
    $region2: #{tpu_custom_call.1} parent=1 // pred_check
      _
    $region3: #{tpu_custom_call.1} parent=1 // pred_check_branch
      %12 = sbr.rel (0) target = $region5
    $region4: #{tpu_custom_call.1} parent=1 // pred_region
      %s14 = ssub.s32 256, 256
      %15 = vsyncadd [#allocation3], %s14
      %s16 = sshll.u32 [#allocation2], 4
      %s17 = int_to_ptr.vmem [resolvable:$true] %s16
      %22 = dma.hbm_to_vmem [thread:$0]  %s0, 256, %s17, [#allocation3], 128, 128, 8
    $region5: #{tpu_custom_call.1} parent=1 // pred_fallthru
      _
    // Predicated region
    $region6: #{tpu_custom_call.1} parent=1 // pred_check
      _
    $region7: #{tpu_custom_call.1} parent=1 // pred_check_branch
      %24 = sbr.rel (0) target = $region9
    $region8: #{tpu_custom_call.1} parent=1 // pred_region
      %s26 = ssub.s32 512, 512
      %27 = vsyncadd [#allocation6], %s26
      %s28 = sshll.u32 [#allocation5], 4
      %s29 = int_to_ptr.vmem [resolvable:$true] %s28
      %34 = dma.hbm_to_vmem [thread:$0]  %s1, 512, %s29, [#allocation6], 128, 128, 8
    $region9: #{tpu_custom_call.1} parent=1 // pred_fallthru
      _
    // Predicated region
    $region10: #{tpu_custom_call.1} parent=1 // pred_check
      _
    $region11: #{tpu_custom_call.1} parent=1 // pred_check_branch
      %36 = sbr.rel (0) target = $region13
    $region12: #{tpu_custom_call.1} parent=1 // pred_region
      _
    $region13: #{tpu_custom_call.1} parent=1 // pred_fallthru
      _
    // Predicated region
    $region14: #{tpu_custom_call.1} parent=1 // pred_check
      _
    $region15: #{tpu_custom_call.1} parent=1 // pred_check_branch
      %38 = sbr.rel (0) target = $region17
    $region16: #{tpu_custom_call.1} parent=1 // pred_region
      %39 = dma.done [#allocation3], 256
    $region17: #{tpu_custom_call.1} parent=1 // pred_fallthru
      _
    // Predicated region
    $region18: #{tpu_custom_call.1} parent=1 // pred_check
      _
    $region19: #{tpu_custom_call.1} parent=1 // pred_check_branch
      %41 = sbr.rel (0) target = $region21
    $region20: #{tpu_custom_call.1} parent=1 // pred_region
      %42 = dma.done [#allocation6], 512
    $region21: #{tpu_custom_call.1} parent=1 // pred_fallthru
      _
    %v43 = vld [vmem:[#allocation2] sm:$0xff]
    %v44 = vld [vmem:[#allocation2 + $0x8] sm:$0xff]
    %v45 = vld [vmem:[#allocation5] sm:$0xff]
    %v46 = vld [vmem:[#allocation5 + $0x8] sm:$0xff]
    %v47 = vld [vmem:[#allocation5 + $0x10] sm:$0xff]
    %v48 = vld [vmem:[#allocation5 + $0x18] sm:$0xff]
    %v49 = vld [vmem:[%s2] sm:$0x1]
    %v51 = vlaneseq
    %v52 = vshrl.u32 %v51, 7
    %v53 = vsub.s32 0, %v52
    %v54 = vrot.slane %v49, %v53
    %vm56 = vcmask 261120
    %v58 = vsel %vm56, %v43, 0
    %v61 = vsel %vm56, %v44, 0
    %63 = vmatprep.subr.mxu0 0.0
    %64 = vmatpush1.msra.mxu0 %v45
    %65 = vmatprep.subr.mxu0 0.0
    %66 = vmatpush1.msra.mxu0 %v46
    %67 = vmatprep.subr.mxu0 0.0
    %68 = vmatpush1.msra.mxu0 %v47
    %69 = vmatprep.subr.mxu0 0.0
    %70 = vmatpush1.msra.mxu0 %v48
    %71 = vmatprep.subr.mxu0 0.0
    %72 = vmatpush1.msra.mxu0 0.0
    %73 = vmatprep.subr.mxu0 0.0
    %74 = vmatpush1.msra.mxu0 0.0
    %75 = vmatprep.subr.mxu0 0.0
    %76 = vmatpush1.msra.mxu0 0.0
    %77 = vmatprep.subr.mxu0 0.0
    %78 = vmatpush1.msra.mxu0 0.0
    %79 = vmatprep.subr.mxu0 0.0
    %80 = vmatpush1.msra.mxu0 0.0
    %81 = vmatprep.subr.mxu0 0.0
    %82 = vmatpush1.msra.mxu0 0.0
    %83 = vmatprep.subr.mxu0 0.0
    %84 = vmatpush1.msra.mxu0 0.0
    %85 = vmatprep.subr.mxu0 0.0
    %86 = vmatpush1.msra.mxu0 0.0
    %87 = vmatprep.subr.mxu0 0.0
    %88 = vmatpush1.msra.mxu0 0.0
    %89 = vmatprep.subr.mxu0 0.0
    %90 = vmatpush1.msra.mxu0 0.0
    %91 = vmatprep.subr.mxu0 0.0
    %92 = vmatpush1.msra.mxu0 0.0
    %93 = vmatprep.subr.mxu0 0.0
    %94 = vmatpush1.msra.mxu0 0.0
    %95 = vmatprep.subr.mxu0 0.0
    %96 = vmatpush1.msra.mxu0 0.0
    %97 = vmatprep.subr.mxu0 0.0
    %98 = vmatpush1.msra.mxu0 0.0
    %99 = vmatprep.subr.mxu0 0.0
    %100 = vmatpush1.msra.mxu0 0.0
    %101 = vmatprep.subr.mxu0 0.0
    %102 = vmatpush1.msra.mxu0 0.0
    %103 = vmatprep.subr.mxu0 0.0
    %104 = vmatpush1.msra.mxu0 0.0
    %105 = vmatprep.subr.mxu0 0.0
    %106 = vmatpush1.msra.mxu0 0.0
    %107 = vmatprep.subr.mxu0 0.0
    %108 = vmatpush1.msra.mxu0 0.0
    %109 = vmatprep.subr.mxu0 0.0
    %110 = vmatpush1.msra.mxu0 0.0
    %111 = vmatprep.subr.mxu0 0.0
    %112 = vmatpush1.msra.mxu0 0.0
    %113 = vmatprep.subr.mxu0 0.0
    %114 = vmatpush1.msra.mxu0 0.0
    %115 = vmatprep.subr.mxu0 0.0
    %116 = vmatpush1.msra.mxu0 0.0
    %117 = vmatprep.subr.mxu0 0.0
    %118 = vmatpush1.msra.mxu0 0.0
    %119 = vmatprep.subr.mxu0 0.0
    %120 = vmatpush1.msra.mxu0 0.0
    %121 = vmatprep.subr.mxu0 0.0
    %122 = vmatpush1.msra.mxu0 0.0
    %123 = vmatprep.subr.mxu0 0.0
    %124 = vmatpush1.msra.mxu0 0.0
    %125 = vmatprep.subr.mxu0 0.0
    %126 = vmatpush1.msra.mxu0 0.0
    %127 = vmatprep.mubr.f32.mxu0 0.0
    %128 = vmatmul.mubr.f32.gmra.mrb[0].mxu0 %v58
    %v129 = vpop.f32.mrb[0].mxu0
    %v130 = vadd.f32 %v54, %v129
    %v131 = vpop.f32.mrb[0].mxu0
    %132 = vmatprep.mubr.f32.mxu0 0.0
    %133 = vmatmul.mubr.f32.gmra.mrb[0].mxu0 %v61
    %v134 = vpop.f32.mrb[0].mxu0
    %v135 = vadd.f32 %v54, %v134
    %v136 = vpop.f32.mrb[0].mxu0
    %137 = vdwg.mxu0
    %138 = vst.msk [vmem:[#allocation7] sm:$0xff] %vm56, %v130
    %139 = vst.msk [vmem:[#allocation7 + $0x8] sm:$0xff] %vm56, %v135
    // Predicated region
    $region22: #{tpu_custom_call.1} parent=1 // pred_check
      _
    $region23: #{tpu_custom_call.1} parent=1 // pred_check_branch
      %141 = sbr.rel (0) target = $region25
    $region24: #{tpu_custom_call.1} parent=1 // pred_region
      %s143 = ssub.s32 256, 256
      %144 = vsyncadd [#allocation4], %s143
      %s145 = sshll.u32 [#allocation7], 4
      %s146 = int_to_ptr.vmem [resolvable:$true] %s145
      %151 = dma.vmem_to_hbm [thread:$0]  %s146, 256, %s3, [#allocation4], 128, 128, 8
    $region25: #{tpu_custom_call.1} parent=1 // pred_fallthru
      _
    // Predicated region
    $region26: #{tpu_custom_call.1} parent=1 // pred_check
      _
    $region27: #{tpu_custom_call.1} parent=1 // pred_check_branch
      %153 = sbr.rel (0) target = $region29
    $region28: #{tpu_custom_call.1} parent=1 // pred_region
      %154 = dma.done [#allocation4], 256
    $region29: #{tpu_custom_call.1} parent=1 // pred_fallthru
      _
    %155 = vsyncpa [#allocation3], 1
    %156 = vsyncpa [#allocation6], 1
    %157 = vsyncpa [#allocation4], 1

</llo_original>
